<compile_context>
chip_gen: v7x
topology: tpu7x:2x2x1
jax: 0.10.0
libtpu: 0.0.40
codegen_flags: <defaults>
</compile_context>

<pallas_src>
import jax
import jax.numpy as jnp
from jax.experimental import pallas as pl
from jax.experimental.pallas import tpu as pltpu

_LANE = 128
_TILE_BYTES = 4 << 20          # ~4 MiB tiles: >95% of HBM roofline on all gens
_VMEM_LIMIT = 32 << 20         # covers 4 x 4 MiB buffers + internal scratch


def _round_up(x, m):
    return ((x + m - 1) // m) * m


def _make_scale_kernel(sensitivity):
    """Bake the scalar into the kernel (compile-time constant, no SMEM input)."""

    def kernel(x_ref, o_ref):
        o_ref[...] = x_ref[...] * sensitivity   # weak-typed: keeps x's dtype

    return kernel


def _dim_semantics(core_parallel):
    if core_parallel:
        cp = getattr(pltpu, "CORE_PARALLEL", None)  # v7x dual-TC sharding
        if cp is not None:
            return (cp,)
    return ("parallel",)


def sensitivity_forward(x, sensitivity, *, tile_bytes=_TILE_BYTES,
                        donate_input=False, core_parallel=False):
    """Elementwise y = sensitivity * x computed in Pallas TPU kernels.

    x: any-shaped float array (e.g. NCHW).  sensitivity: Python scalar
    (compile-time constant, as in the PyTorch module).
    donate_input: only meaningful when x.size is a multiple of 128; the output
    then reuses the input HBM buffer (caller must not reuse x afterwards).
    core_parallel: opt-in v7x dual-TensorCore grid sharding.
    """
    orig_shape = x.shape
    dtype = x.dtype
    total = x.size
    if total == 0:
        return jnp.reshape(x, orig_shape)

    itemsize = jnp.dtype(dtype).itemsize
    rem = total % _LANE
    bulk_total = total - rem
    x_flat = jnp.reshape(x, (-1,))

    bulk_out = None
    if bulk_total:
        rows = bulk_total // _LANE
        x2d = jnp.reshape(x_flat[:bulk_total] if rem else x_flat, (rows, _LANE))

        # dtype-aware sublane packing: 8 (4B), 16 (2B), 32 (1B).
        packing = max(8, 32 // itemsize)
        budget_rows = max(packing, tile_bytes // (_LANE * itemsize))
        if rows <= budget_rows:
            # Full-array block: always legal regardless of (8,128) divisibility.
            tile_rows = rows
        else:
            # Balance blocks so the last step isn't a tiny stub (e.g. 2112 rows
            # -> 2 x 1056 instead of 2048 + 64).
            n_blocks = pl.cdiv(rows, budget_rows)
            tile_rows = min(_round_up(pl.cdiv(rows, n_blocks), packing), rows)
        grid = (pl.cdiv(rows, tile_rows),)

        bulk_out = pl.pallas_call(
            _make_scale_kernel(sensitivity),
            out_shape=jax.ShapeDtypeStruct((rows, _LANE), dtype),
            grid=grid,
            in_specs=[pl.BlockSpec((tile_rows, _LANE), lambda i: (i, 0))],
            out_specs=pl.BlockSpec((tile_rows, _LANE), lambda i: (i, 0)),
            input_output_aliases=({0: 0} if (donate_input and rem == 0) else {}),
            cost_estimate=pl.CostEstimate(
                flops=bulk_total,
                transcendentals=0,
                bytes_accessed=2 * bulk_total * itemsize,
            ),
            compiler_params=pltpu.CompilerParams(
                dimension_semantics=_dim_semantics(core_parallel),
                vmem_limit_bytes=int(max(_VMEM_LIMIT, 5 * tile_bytes)),
            ),
        )(x2d)

    tail_out = None
    if rem:
        # <128-element tail: single full-block call (block == full array dims),
        # avoids the pad + slice extra HBM passes of the previous version.
        tail = jnp.reshape(x_flat[bulk_total:], (1, rem))
        tail_out = pl.pallas_call(
            _make_scale_kernel(sensitivity),
            out_shape=jax.ShapeDtypeStruct((1, rem), dtype),
        )(tail)

    if bulk_out is None:
        out_flat = jnp.reshape(tail_out, (-1,))
    elif tail_out is None:
        out_flat = jnp.reshape(bulk_out, (-1,))
    else:
        out_flat = jnp.concatenate(
            [jnp.reshape(bulk_out, (-1,)), jnp.reshape(tail_out, (-1,))])
    return jnp.reshape(out_flat, orig_shape)


if __name__ == "__main__":
    sensitivity = 0.5  # fixed "parameter" from __init__(s)

    # Primary small NCHW input consistent with the module's usage.
    x = jax.random.normal(jax.random.PRNGKey(0), (2, 4, 16, 16), dtype=jnp.float32)
    y = jax.block_until_ready(sensitivity_forward(x, sensitivity))
    assert y.shape == x.shape and y.dtype == x.dtype
    assert jnp.allclose(y, sensitivity * x, atol=1e-6, rtol=1e-6)

    k1, k2, k3, k4 = jax.random.split(jax.random.PRNGKey(1), 4)

    # Multi-block balanced path + partial trailing block: 2120 rows with a
    # 64 KiB tile budget -> 17 blocks of 128 rows, last block 72 rows (masked).
    x2 = jax.random.normal(k1, (1, 8, 265, 128), dtype=jnp.float32)
    y2 = jax.block_until_ready(
        sensitivity_forward(x2, sensitivity, tile_bytes=64 << 10))
    assert jnp.allclose(y2, sensitivity * x2, atol=1e-6, rtol=1e-6)

    # Ragged element count (not a multiple of 128): bulk kernel + tiny tail call.
    x3 = jax.random.normal(k2, (3, 5, 11, 13), dtype=jnp.float32)
    y3 = jax.block_until_ready(sensitivity_forward(x3, sensitivity))
    assert jnp.allclose(y3, sensitivity * x3, atol=1e-6, rtol=1e-6)

    # bf16 path exercising dtype-aware packing (16-row sublane multiples).
    x4 = jax.random.normal(k3, (1, 8, 264, 128), dtype=jnp.bfloat16)
    y4 = jax.block_until_ready(
        sensitivity_forward(x4, sensitivity, tile_bytes=32 << 10))
    assert y4.dtype == jnp.bfloat16
    assert jnp.allclose(y4.astype(jnp.float32),
                        (sensitivity * x4).astype(jnp.float32),
                        atol=1e-2, rtol=1e-2)

    # Tiny input (< 128 elements): tail-only path.
    x5 = jax.random.normal(k4, (2, 3, 4), dtype=jnp.float32)
    y5 = jax.block_until_ready(sensitivity_forward(x5, sensitivity))
    assert jnp.allclose(y5, sensitivity * x5, atol=1e-6, rtol=1e-6)

    print("KERNEL_OK")
</pallas_src>

<mosaic_0001>
module attributes {stable_mosaic.version = 11 : i64} {
  func.func @kernel(%arg0: i32, %arg1: memref<16x128xf32, #tpu.memory_space<vmem>>, %arg2: memref<16x128xf32, #tpu.memory_space<vmem>>) attributes {dimension_semantics = [#tpu.dimension_semantics<parallel>], iteration_bounds = array<i64: 1>, scalar_prefetch = 0 : i64, scratch_operands = 0 : i64, tpu.core_type = #tpu.core_type<tc>, window_params = [{transform_indices = @transform_0, window_bounds = array<i64: 16, 128>}, {transform_indices = @transform_1, window_bounds = array<i64: 16, 128>}]} {
    %c0 = arith.constant 0 : index
    %c0_0 = arith.constant 0 : index
    %0 = vector.load %arg1[%c0, %c0_0] : memref<16x128xf32, #tpu.memory_space<vmem>>, vector<16x128xf32>
    %cst = arith.constant 5.000000e-01 : f32
    %1 = vector.broadcast %cst : f32 to vector<16x128xf32>
    %2 = arith.mulf %0, %1 : vector<16x128xf32>
    %c0_1 = arith.constant 0 : index
    %c0_2 = arith.constant 0 : index
    %3 = vector.load %arg2[%c0_1, %c0_2] : memref<16x128xf32, #tpu.memory_space<vmem>>, vector<16x128xf32>
    tpu.vector_store %arg2[%c0_1, %c0_2], %2 {strides = array<i32>} : memref<16x128xf32, #tpu.memory_space<vmem>>, vector<16x128xf32>,
    return
  }
  func.func @transform_0(%arg0: i32) -> (i32, i32) {
    %c0_i32 = arith.constant 0 : i32
    %c0_i32_0 = arith.constant 0 : i32
    return %arg0, %c0_i32 : i32, i32
  }
  func.func @transform_1(%arg0: i32) -> (i32, i32) {
    %c0_i32 = arith.constant 0 : i32
    %c0_i32_0 = arith.constant 0 : i32
    return %arg0, %c0_i32 : i32, i32
  }
}

</mosaic_0001>

<llo_original>
// kernel: tpu_custom_call.1
$region0: #{tpu_custom_call.1}
  #allocation0 [shape = 'u32[]', space=smem, size = 0x4, offset = 0x4, fixed_abs, tag = 'smem constant byte address 0x4 - core index']
  #allocation1 [shape = 'u32[144,128]{1,0:T(1,128)}', space=vmem, size = 0x12000, scoped, tag = 'internal scratch']
  %s0 = inlined_call_operand.hbm [shape: f32[16,128], index: 0, kind: input, shape index: {}]
  %s1 = inlined_call_operand.hbm [shape: f32[16,128], index: 1, kind: output, shape index: {}]
  %s2 = sld [smem:[#allocation0]]
  $region18: #{tpu_custom_call.1} parent=0
    _
  %s4 = ssub.s32 1, %s2
  %s5 = scalar_select 0, %s4, %s2
  $region1: #{tpu_custom_call.1} parent=0
    #allocation2 [shape = 'u8[8192]{0}', space=vmem, size = 0x2000, scoped, tag = 'input window, operand 0, single buffered']
    #allocation3 [shape = 's32[1]{0}', space=sflag, size = 0x4, scoped, tag = 'scoped memory for tpu_custom_call.1']
    #allocation4 [shape = 's32[1]{0}', space=sflag, size = 0x4, scoped, tag = 'scoped memory for tpu_custom_call.1']
    #allocation5 [shape = 'u8[8192]{0}', space=vmem, size = 0x2000, scoped, tag = 'output window, operand 0, single buffered']
    %6 = vsyncpa [#allocation3], 0
    %7 = vsyncpa [#allocation4], 0
    // Predicated region
    $region2: #{tpu_custom_call.1} parent=1 // pred_check
      _
    $region3: #{tpu_custom_call.1} parent=1 // pred_check_branch
      %9 = sbr.rel (0) target = $region5
    $region4: #{tpu_custom_call.1} parent=1 // pred_region
      %s11 = ssub.s32 256, 256
      %12 = vsyncadd [#allocation3], %s11
      %s13 = sshll.u32 [#allocation2], 4
      %s14 = int_to_ptr.vmem [resolvable:$true] %s13
      %19 = dma.hbm_to_vmem [thread:$0]  %s0, 256, %s14, [#allocation3], 128, 128, 8
    $region5: #{tpu_custom_call.1} parent=1 // pred_fallthru
      _
    // Predicated region
    $region6: #{tpu_custom_call.1} parent=1 // pred_check
      _
    $region7: #{tpu_custom_call.1} parent=1 // pred_check_branch
      %21 = sbr.rel (0) target = $region9
    $region8: #{tpu_custom_call.1} parent=1 // pred_region
      %22 = dma.done [#allocation3], 256
    $region9: #{tpu_custom_call.1} parent=1 // pred_fallthru
      _
    %v23 = vld [vmem:[#allocation2] sm:$0xff]
    %v24 = vld [vmem:[#allocation2 + $0x8] sm:$0xff]
    %v25 = vmul.f32 %v23, 0.5
    %v26 = vmul.f32 %v24, 0.5
    %27 = vst [vmem:[#allocation5] sm:$0xff] %v25
    %28 = vst [vmem:[#allocation5 + $0x8] sm:$0xff] %v26
    // Predicated region
    $region10: #{tpu_custom_call.1} parent=1 // pred_check
      _
    $region11: #{tpu_custom_call.1} parent=1 // pred_check_branch
      %30 = sbr.rel (0) target = $region13
    $region12: #{tpu_custom_call.1} parent=1 // pred_region
      %s32 = ssub.s32 256, 256
      %33 = vsyncadd [#allocation4], %s32
      %s34 = sshll.u32 [#allocation5], 4
      %s35 = int_to_ptr.vmem [resolvable:$true] %s34
      %40 = dma.vmem_to_hbm [thread:$0]  %s35, 256, %s1, [#allocation4], 128, 128, 8
    $region13: #{tpu_custom_call.1} parent=1 // pred_fallthru
      _
    // Predicated region
    $region14: #{tpu_custom_call.1} parent=1 // pred_check
      _
    $region15: #{tpu_custom_call.1} parent=1 // pred_check_branch
      %42 = sbr.rel (0) target = $region17
    $region16: #{tpu_custom_call.1} parent=1 // pred_region
      %43 = dma.done [#allocation4], 256
    $region17: #{tpu_custom_call.1} parent=1 // pred_fallthru
      _
    %44 = vsyncpa [#allocation3], 1
    %45 = vsyncpa [#allocation4], 1

</llo_original>
